<compile_context>
chip_gen: v6e
topology: v6e:2x2x1
jax: 0.10.0
libtpu: 0.0.40
codegen_flags: <defaults>
</compile_context>

<pallas_src>
import jax
import jax.numpy as jnp
from jax.experimental import pallas as pl
from jax.experimental.pallas import tpu as pltpu


def _round_up(n, m):
    return ((n + m - 1) // m) * m


def actionnet_kernel(x_ref, w1_ref, b1_ref, w2_ref, b2_ref, o_ref):
    # Packed fc1 -> ReLU -> fc2. Block-diagonal weights mean there is no mixing
    # between the P lane-blocks, so this is numerically identical to the per-row
    # relu(x @ w1 + b1) @ w2 + b2 of the reference module.
    # TODO(synk): pass precision=jax.lax.Precision.HIGHEST if bit-level f32
    # agreement with PyTorch is required (costs extra MXU passes).
    h = jnp.dot(x_ref[...], w1_ref[...], preferred_element_type=jnp.float32)
    h = jnp.maximum(h + b1_ref[...], 0.0)                       # fc1 bias + ReLU
    out = jnp.dot(h, w2_ref[...], preferred_element_type=jnp.float32) + b2_ref[...]
    o_ref[...] = out.astype(o_ref.dtype)


def action_net_forward(goals, environment_only, agent_only, params, *, max_tile_rows=4096):
    """Fused ActionNet forward. Inputs (B, G), (B, E), (B, A); output (B, 9)."""
    w1, b1, w2, b2 = params
    B = goals.shape[0]
    S = goals.shape[1] + environment_only.shape[1] + agent_only.shape[1]
    assert w1.shape[0] == S, "w1 rows must equal concatenated feature size"
    hid = w1.shape[1]
    n_out = w2.shape[1]

    # Lane-packing factor: P rows per 128-lane vreg row (P=8 for states_size=16).
    P = max(1, 128 // S)
    packed_in, packed_hid, packed_out = P * S, P * hid, P * n_out

    # Block-diagonal replicated weights / tiled biases (tiny, built once per call).
    eye = jnp.eye(P, dtype=w1.dtype)
    w1_blk = jnp.kron(eye, w1)                       # (P*S,   P*hid)
    w2_blk = jnp.kron(eye, w2)                       # (P*hid, P*n_out)
    b1_rep = jnp.tile(b1, P).reshape(1, packed_hid)
    b2_rep = jnp.tile(b2, P).reshape(1, packed_out)

    # One lane-dense packed operand: concat + tiny pad + reshape fuse into a
    # single XLA copy. Padding is at most 8*P - 1 (= 63) rows.
    x = jnp.concatenate([goals, environment_only, agent_only], axis=1)   # (B, S)
    b_padded = _round_up(B, 8 * P)
    if b_padded != B:
        x = jnp.pad(x, ((0, b_padded - B), (0, 0)))
    n_rows = b_padded // P
    x_packed = x.reshape(n_rows, packed_in)          # 8 batch rows per vreg row

    # Batch tile (in packed rows): multiple of 8 sublanes, >= 2 grid steps when
    # possible (keeps both v7x cores busy), capped so the double-buffered
    # per-step footprint stays ~8-10 MiB on every generation.
    tile_rows = min(max_tile_rows, _round_up(pl.cdiv(n_rows, 2), 8))
    tile_rows = max(8, tile_rows)
    grid = (pl.cdiv(n_rows, tile_rows),)             # ragged last block is masked

    def resident(shape):
        # Constant block index -> fetched once, stays resident across grid steps.
        return pl.BlockSpec(shape, lambda i: (0, 0))

    out_packed = pl.pallas_call(
        actionnet_kernel,
        out_shape=jax.ShapeDtypeStruct((n_rows, packed_out), jnp.float32),
        grid=grid,
        in_specs=[
            pl.BlockSpec((tile_rows, packed_in), lambda i: (i, 0)),
            resident(w1_blk.shape),
            resident(b1_rep.shape),
            resident(w2_blk.shape),
            resident(b2_rep.shape),
        ],
        out_specs=pl.BlockSpec((tile_rows, packed_out), lambda i: (i, 0)),
        compiler_params=pltpu.CompilerParams(
            dimension_semantics=("parallel",),        # shard batch tiles across cores
            vmem_limit_bytes=32 * 1024 * 1024,        # ample headroom, fits v7x's 64 MiB
        ),
    )(x_packed, w1_blk, b1_rep, w2_blk, b2_rep)

    # Unpack (n_rows, P*9) -> (b_padded, 9) and drop padded garbage rows.
    return out_packed.reshape(b_padded, n_out)[:B]


def init_params(states_size, key):
    # Deterministic synthetic init (PyTorch Linear-like uniform bounds),
    # weights stored pre-transposed as (in_features, out_features).
    k1, k2, k3, k4 = jax.random.split(key, 4)
    bound1 = 1.0 / jnp.sqrt(states_size)
    bound2 = 1.0 / jnp.sqrt(12.0)
    w1 = jax.random.uniform(k1, (states_size, 12), jnp.float32, -bound1, bound1)
    b1 = jax.random.uniform(k2, (12,), jnp.float32, -bound1, bound1)
    w2 = jax.random.uniform(k3, (12, 9), jnp.float32, -bound2, bound2)
    b2 = jax.random.uniform(k4, (9,), jnp.float32, -bound2, bound2)
    return w1, b1, w2, b2


def _reference(g, e, a, params):
    w1, b1, w2, b2 = params
    x = jnp.concatenate([g, e, a], axis=1)
    return jnp.maximum(x @ w1 + b1, 0.0) @ w2 + b2


if __name__ == "__main__":
    key = jax.random.PRNGKey(0)
    kg, ke, ka, kp = jax.random.split(key, 4)

    batch = 2
    goals = jax.random.normal(kg, (batch, 4), jnp.float32)
    environment_only = jax.random.normal(ke, (batch, 8), jnp.float32)
    agent_only = jax.random.normal(ka, (batch, 4), jnp.float32)
    states_size = goals.shape[1] + environment_only.shape[1] + agent_only.shape[1]

    params = init_params(states_size, kp)

    actions = action_net_forward(goals, environment_only, agent_only, params)
    jax.block_until_ready(actions)

    ref = _reference(goals, environment_only, agent_only, params)
    assert actions.shape == (batch, 9)
    assert jnp.allclose(actions, ref, atol=1e-4, rtol=1e-4), "mismatch vs reference (B=2)"

    # Larger, non-multiple batch exercises the multi-step grid, the ragged
    # (masked) last block, the packed-lane padding path, and resident weights.
    kg2, ke2, ka2 = jax.random.split(jax.random.PRNGKey(1), 3)
    big = 300
    goals2 = jax.random.normal(kg2, (big, 4), jnp.float32)
    env2 = jax.random.normal(ke2, (big, 8), jnp.float32)
    agent2 = jax.random.normal(ka2, (big, 4), jnp.float32)
    actions2 = action_net_forward(goals2, env2, agent2, params, max_tile_rows=16)
    jax.block_until_ready(actions2)
    ref2 = _reference(goals2, env2, agent2, params)
    assert actions2.shape == (big, 9)
    assert jnp.allclose(actions2, ref2, atol=1e-4, rtol=1e-4), "mismatch vs reference (B=300)"

    print("KERNEL_OK")
</pallas_src>

<mosaic_0001>
module attributes {stable_mosaic.version = 11 : i64} {
  func.func @actionnet_kernel(%arg0: i32, %arg1: memref<8x128xf32, #tpu.memory_space<vmem>>, %arg2: memref<128x96xf32, #tpu.memory_space<vmem>>, %arg3: memref<1x96xf32, #tpu.memory_space<vmem>>, %arg4: memref<96x72xf32, #tpu.memory_space<vmem>>, %arg5: memref<1x72xf32, #tpu.memory_space<vmem>>, %arg6: memref<8x72xf32, #tpu.memory_space<vmem>>) attributes {dimension_semantics = [#tpu.dimension_semantics<parallel>], iteration_bounds = array<i64: 1>, scalar_prefetch = 0 : i64, scratch_operands = 0 : i64, tpu.core_type = #tpu.core_type<tc>, window_params = [{transform_indices = @transform_0, window_bounds = array<i64: 8, 128>}, {pipeline_mode = #tpu.pipeline_mode<synchronous>, transform_indices = @transform_1, window_bounds = array<i64: 128, 96>}, {pipeline_mode = #tpu.pipeline_mode<synchronous>, transform_indices = @transform_2, window_bounds = array<i64: 1, 96>}, {pipeline_mode = #tpu.pipeline_mode<synchronous>, transform_indices = @transform_3, window_bounds = array<i64: 96, 72>}, {pipeline_mode = #tpu.pipeline_mode<synchronous>, transform_indices = @transform_4, window_bounds = array<i64: 1, 72>}, {transform_indices = @transform_5, window_bounds = array<i64: 8, 72>}]} {
    %c0 = arith.constant 0 : index
    %c0_0 = arith.constant 0 : index
    %0 = vector.load %arg1[%c0, %c0_0] : memref<8x128xf32, #tpu.memory_space<vmem>>, vector<8x128xf32>
    %c0_1 = arith.constant 0 : index
    %c0_2 = arith.constant 0 : index
    %1 = vector.load %arg2[%c0_1, %c0_2] : memref<128x96xf32, #tpu.memory_space<vmem>>, vector<128x96xf32>
    %cst = arith.constant dense<0.000000e+00> : vector<8x96xf32>
    %2 = tpu.matmul %0, %1, %cst {dimension_numbers = #tpu.dot_dimension_numbers<[1], [0], [0], [1], [0, 0, 1, 1], [], []>} : vector<8x128xf32>, vector<128x96xf32>, vector<8x96xf32> -> vector<8x96xf32>
    %c0_3 = arith.constant 0 : index
    %c0_4 = arith.constant 0 : index
    %3 = vector.load %arg3[%c0_3, %c0_4] : memref<1x96xf32, #tpu.memory_space<vmem>>, vector<1x96xf32>
    %4 = vector.broadcast %3 : vector<1x96xf32> to vector<8x96xf32>
    %5 = arith.addf %2, %4 : vector<8x96xf32>
    %cst_5 = arith.constant 0.000000e+00 : f32
    %6 = vector.broadcast %cst_5 : f32 to vector<8x96xf32>
    %7 = arith.maximumf %5, %6 : vector<8x96xf32>
    %c0_6 = arith.constant 0 : index
    %c0_7 = arith.constant 0 : index
    %8 = vector.load %arg4[%c0_6, %c0_7] : memref<96x72xf32, #tpu.memory_space<vmem>>, vector<96x72xf32>
    %cst_8 = arith.constant dense<0.000000e+00> : vector<8x72xf32>
    %9 = tpu.matmul %7, %8, %cst_8 {dimension_numbers = #tpu.dot_dimension_numbers<[1], [0], [0], [1], [0, 0, 1, 1], [], []>} : vector<8x96xf32>, vector<96x72xf32>, vector<8x72xf32> -> vector<8x72xf32>
    %c0_9 = arith.constant 0 : index
    %c0_10 = arith.constant 0 : index
    %10 = vector.load %arg5[%c0_9, %c0_10] : memref<1x72xf32, #tpu.memory_space<vmem>>, vector<1x72xf32>
    %11 = vector.broadcast %10 : vector<1x72xf32> to vector<8x72xf32>
    %12 = arith.addf %9, %11 : vector<8x72xf32>
    %c0_11 = arith.constant 0 : index
    %c0_12 = arith.constant 0 : index
    %13 = vector.load %arg6[%c0_11, %c0_12] : memref<8x72xf32, #tpu.memory_space<vmem>>, vector<8x72xf32>
    tpu.vector_store %arg6[%c0_11, %c0_12], %12 {strides = array<i32>} : memref<8x72xf32, #tpu.memory_space<vmem>>, vector<8x72xf32>,
    return
  }
  func.func @transform_0(%arg0: i32) -> (i32, i32) {
    %c0_i32 = arith.constant 0 : i32
    %c0_i32_0 = arith.constant 0 : i32
    return %arg0, %c0_i32 : i32, i32
  }
  func.func @transform_1(%arg0: i32) -> (i32, i32) {
    %c0_i32 = arith.constant 0 : i32
    %c0_i32_0 = arith.constant 0 : i32
    %c0_i32_1 = arith.constant 0 : i32
    return %c0_i32, %c0_i32_0 : i32, i32
  }
  func.func @transform_2(%arg0: i32) -> (i32, i32) {
    %c0_i32 = arith.constant 0 : i32
    %c0_i32_0 = arith.constant 0 : i32
    %c0_i32_1 = arith.constant 0 : i32
    return %c0_i32, %c0_i32_0 : i32, i32
  }
  func.func @transform_3(%arg0: i32) -> (i32, i32) {
    %c0_i32 = arith.constant 0 : i32
    %c0_i32_0 = arith.constant 0 : i32
    %c0_i32_1 = arith.constant 0 : i32
    return %c0_i32, %c0_i32_0 : i32, i32
  }
  func.func @transform_4(%arg0: i32) -> (i32, i32) {
    %c0_i32 = arith.constant 0 : i32
    %c0_i32_0 = arith.constant 0 : i32
    %c0_i32_1 = arith.constant 0 : i32
    return %c0_i32, %c0_i32_0 : i32, i32
  }
  func.func @transform_5(%arg0: i32) -> (i32, i32) {
    %c0_i32 = arith.constant 0 : i32
    %c0_i32_0 = arith.constant 0 : i32
    return %arg0, %c0_i32 : i32, i32
  }
}

</mosaic_0001>

<llo_original>
// kernel: tpu_custom_call.1
$region0: #{tpu_custom_call.1}
  #allocation0 [shape = 'u32[]', space=smem, size = 0x4, offset = 0x4, fixed_abs, tag = 'smem constant byte address 0x4 - core index']
  #allocation1 [shape = 'u32[144,128]{1,0:T(1,128)}', space=vmem, size = 0x12000, scoped, tag = 'internal scratch']
  %s0 = inlined_call_operand.vmem [shape: f32[8,128], index: 0, kind: input, shape index: {}]
  %s1 = inlined_call_operand.vmem [shape: f32[128,96], index: 1, kind: input, shape index: {}]
  %s2 = inlined_call_operand.vmem [shape: f32[1,96], index: 2, kind: input, shape index: {}]
  %s3 = inlined_call_operand.vmem [shape: f32[96,72], index: 3, kind: input, shape index: {}]
  %s4 = inlined_call_operand.vmem [shape: f32[1,72], index: 4, kind: input, shape index: {}]
  %s5 = inlined_call_operand.hbm [shape: f32[8,72], index: 5, kind: output, shape index: {}]
  %s6 = sld [smem:[#allocation0]]
  $region30: #{tpu_custom_call.1} parent=0
    _
  %s8 = ssub.s32 1, %s6
  %s9 = scalar_select 0, %s8, %s6
  $region1: #{tpu_custom_call.1} parent=0
    #allocation2 [shape = 'u8[4096]{0}', space=vmem, size = 0x1000, scoped, tag = 'output window, operand 0, single buffered']
    #allocation3 [shape = 's32[1]{0}', space=sflag, size = 0x4, scoped, tag = 'scoped memory for tpu_custom_call.1']
    %10 = vsyncpa [#allocation3], 0
    // Predicated region
    $region2: #{tpu_custom_call.1} parent=1 // pred_check
      _
    $region3: #{tpu_custom_call.1} parent=1 // pred_check_branch
      %12 = sbr.rel (0) target = $region5
    $region4: #{tpu_custom_call.1} parent=1 // pred_region
      _
    $region5: #{tpu_custom_call.1} parent=1 // pred_fallthru
      _
    // Predicated region
    $region6: #{tpu_custom_call.1} parent=1 // pred_check
      _
    $region7: #{tpu_custom_call.1} parent=1 // pred_check_branch
      %14 = sbr.rel (0) target = $region9
    $region8: #{tpu_custom_call.1} parent=1 // pred_region
      _
    $region9: #{tpu_custom_call.1} parent=1 // pred_fallthru
      _
    // Predicated region
    $region10: #{tpu_custom_call.1} parent=1 // pred_check
      _
    $region11: #{tpu_custom_call.1} parent=1 // pred_check_branch
      %16 = sbr.rel (0) target = $region13
    $region12: #{tpu_custom_call.1} parent=1 // pred_region
      _
    $region13: #{tpu_custom_call.1} parent=1 // pred_fallthru
      _
    // Predicated region
    $region14: #{tpu_custom_call.1} parent=1 // pred_check
      _
    $region15: #{tpu_custom_call.1} parent=1 // pred_check_branch
      %18 = sbr.rel (0) target = $region17
    $region16: #{tpu_custom_call.1} parent=1 // pred_region
      _
    $region17: #{tpu_custom_call.1} parent=1 // pred_fallthru
      _
    // Predicated region
    $region18: #{tpu_custom_call.1} parent=1 // pred_check
      _
    $region19: #{tpu_custom_call.1} parent=1 // pred_check_branch
      %20 = sbr.rel (0) target = $region21
    $region20: #{tpu_custom_call.1} parent=1 // pred_region
      _
    $region21: #{tpu_custom_call.1} parent=1 // pred_fallthru
      _
    %v21 = vld [vmem:[%s0] sm:$0xff]
    %v22 = vld [vmem:[%s1] sm:$0xff]
    %v23 = vld [vmem:[%s1 + $0x8] sm:$0xff]
    %v24 = vld [vmem:[%s1 + $0x10] sm:$0xff]
    %v25 = vld [vmem:[%s1 + $0x18] sm:$0xff]
    %v26 = vld [vmem:[%s1 + $0x20] sm:$0xff]
    %v27 = vld [vmem:[%s1 + $0x28] sm:$0xff]
    %v28 = vld [vmem:[%s1 + $0x30] sm:$0xff]
    %v29 = vld [vmem:[%s1 + $0x38] sm:$0xff]
    %v30 = vld [vmem:[%s1 + $0x40] sm:$0xff]
    %v31 = vld [vmem:[%s1 + $0x48] sm:$0xff]
    %v32 = vld [vmem:[%s1 + $0x50] sm:$0xff]
    %v33 = vld [vmem:[%s1 + $0x58] sm:$0xff]
    %v34 = vld [vmem:[%s1 + $0x60] sm:$0xff]
    %v35 = vld [vmem:[%s1 + $0x68] sm:$0xff]
    %v36 = vld [vmem:[%s1 + $0x70] sm:$0xff]
    %v37 = vld [vmem:[%s1 + $0x78] sm:$0xff]
    %v38 = vld [vmem:[%s2] sm:$0x1]
    %v40 = vlaneseq
    %v41 = vshrl.u32 %v40, 7
    %v42 = vsub.s32 0, %v41
    %v43 = vrot.slane %v38, %v42
    %45 = vmatprep.subr.mxu0 0.0
    %46 = vmatpush1.msra.mxu0 %v37
    %47 = vmatprep.subr.mxu0 0.0
    %48 = vmatpush1.msra.mxu0 %v36
    %49 = vmatprep.subr.mxu0 0.0
    %50 = vmatpush1.msra.mxu0 %v35
    %51 = vmatprep.subr.mxu0 0.0
    %52 = vmatpush1.msra.mxu0 %v34
    %53 = vmatprep.subr.mxu0 0.0
    %54 = vmatpush1.msra.mxu0 %v33
    %55 = vmatprep.subr.mxu0 0.0
    %56 = vmatpush1.msra.mxu0 %v32
    %57 = vmatprep.subr.mxu0 0.0
    %58 = vmatpush1.msra.mxu0 %v31
    %59 = vmatprep.subr.mxu0 0.0
    %60 = vmatpush1.msra.mxu0 %v30
    %61 = vmatprep.subr.mxu0 0.0
    %62 = vmatpush1.msra.mxu0 %v29
    %63 = vmatprep.subr.mxu0 0.0
    %64 = vmatpush1.msra.mxu0 %v28
    %65 = vmatprep.subr.mxu0 0.0
    %66 = vmatpush1.msra.mxu0 %v27
    %67 = vmatprep.subr.mxu0 0.0
    %68 = vmatpush1.msra.mxu0 %v26
    %69 = vmatprep.subr.mxu0 0.0
    %70 = vmatpush1.msra.mxu0 %v25
    %71 = vmatprep.subr.mxu0 0.0
    %72 = vmatpush1.msra.mxu0 %v24
    %73 = vmatprep.subr.mxu0 0.0
    %74 = vmatpush1.msra.mxu0 %v23
    %75 = vmatprep.subr.mxu0 0.0
    %76 = vmatpush1.msra.mxu0 %v22
    %77 = vmatprep.subr.mxu0 0.0
    %78 = vmatpush2.msra.mxu0 0.0
    %79 = vmatprep.subr.mxu0 0.0
    %80 = vmatpush2.msra.mxu0 0.0
    %81 = vmatprep.subr.mxu0 0.0
    %82 = vmatpush2.msra.mxu0 0.0
    %83 = vmatprep.subr.mxu0 0.0
    %84 = vmatpush2.msra.mxu0 0.0
    %85 = vmatprep.subr.mxu0 0.0
    %86 = vmatpush2.msra.mxu0 0.0
    %87 = vmatprep.subr.mxu0 0.0
    %88 = vmatpush2.msra.mxu0 0.0
    %89 = vmatprep.subr.mxu0 0.0
    %90 = vmatpush2.msra.mxu0 0.0
    %91 = vmatprep.subr.mxu0 0.0
    %92 = vmatpush2.msra.mxu0 0.0
    %93 = vmatprep.subr.mxu0 0.0
    %94 = vmatpush2.msra.mxu0 0.0
    %95 = vmatprep.subr.mxu0 0.0
    %96 = vmatpush2.msra.mxu0 0.0
    %97 = vmatprep.subr.mxu0 0.0
    %98 = vmatpush2.msra.mxu0 0.0
    %99 = vmatprep.subr.mxu0 0.0
    %100 = vmatpush2.msra.mxu0 0.0
    %101 = vmatprep.subr.mxu0 0.0
    %102 = vmatpush2.msra.mxu0 0.0
    %103 = vmatprep.subr.mxu0 0.0
    %104 = vmatpush2.msra.mxu0 0.0
    %105 = vmatprep.subr.mxu0 0.0
    %106 = vmatpush2.msra.mxu0 0.0
    %107 = vmatprep.subr.mxu0 0.0
    %108 = vmatpush2.msra.mxu0 0.0
    %109 = vmatprep.mubr.f32.mxu0 0.0
    %110 = vmatmul.mubr.f32.gmra.mxu0 %v21
    %v111 = vpop.f32.mrf.mxu0
    %v112 = vadd.f32 %v43, %v111
    %v113 = vpop.f32.mrf.mxu0
    %114 = vdwg.mxu0
    %v115 = vmax.f32 %v112, 0.0
    %v116 = vld [vmem:[%s3] sm:$0xff]
    %v117 = vld [vmem:[%s3 + $0x8] sm:$0xff]
    %v118 = vld [vmem:[%s3 + $0x10] sm:$0xff]
    %v119 = vld [vmem:[%s3 + $0x18] sm:$0xff]
    %v120 = vld [vmem:[%s3 + $0x20] sm:$0xff]
    %v121 = vld [vmem:[%s3 + $0x28] sm:$0xff]
    %v122 = vld [vmem:[%s3 + $0x30] sm:$0xff]
    %v123 = vld [vmem:[%s3 + $0x38] sm:$0xff]
    %v124 = vld [vmem:[%s3 + $0x40] sm:$0xff]
    %v125 = vld [vmem:[%s3 + $0x48] sm:$0xff]
    %v126 = vld [vmem:[%s3 + $0x50] sm:$0xff]
    %v127 = vld [vmem:[%s3 + $0x58] sm:$0xff]
    %v128 = vld [vmem:[%s4] sm:$0x1]
    %v130 = vlaneseq
    %v131 = vshrl.u32 %v130, 7
    %v132 = vsub.s32 0, %v131
    %v133 = vrot.slane %v128, %v132
    %vm135 = vcmask 785408
    %v137 = vsel %vm135, %v115, 0
    %139 = vmatprep.subr.mxu0 0.0
    %140 = vmatpush1.msra.mxu0 0.0
    %141 = vmatprep.subr.mxu0 0.0
    %142 = vmatpush1.msra.mxu0 0.0
    %143 = vmatprep.subr.mxu0 0.0
    %144 = vmatpush1.msra.mxu0 0.0
    %145 = vmatprep.subr.mxu0 0.0
    %146 = vmatpush1.msra.mxu0 0.0
    %147 = vmatprep.subr.mxu0 0.0
    %148 = vmatpush1.msra.mxu0 %v127
    %149 = vmatprep.subr.mxu0 0.0
    %150 = vmatpush1.msra.mxu0 %v126
    %151 = vmatprep.subr.mxu0 0.0
    %152 = vmatpush1.msra.mxu0 %v125
    %153 = vmatprep.subr.mxu0 0.0
    %154 = vmatpush1.msra.mxu0 %v124
    %155 = vmatprep.subr.mxu0 0.0
    %156 = vmatpush1.msra.mxu0 %v123
    %157 = vmatprep.subr.mxu0 0.0
    %158 = vmatpush1.msra.mxu0 %v122
    %159 = vmatprep.subr.mxu0 0.0
    %160 = vmatpush1.msra.mxu0 %v121
    %161 = vmatprep.subr.mxu0 0.0
    %162 = vmatpush1.msra.mxu0 %v120
    %163 = vmatprep.subr.mxu0 0.0
    %164 = vmatpush1.msra.mxu0 %v119
    %165 = vmatprep.subr.mxu0 0.0
    %166 = vmatpush1.msra.mxu0 %v118
    %167 = vmatprep.subr.mxu0 0.0
    %168 = vmatpush1.msra.mxu0 %v117
    %169 = vmatprep.subr.mxu0 0.0
    %170 = vmatpush1.msra.mxu0 %v116
    %171 = vmatprep.subr.mxu0 0.0
    %172 = vmatpush2.msra.mxu0 0.0
    %173 = vmatprep.subr.mxu0 0.0
    %174 = vmatpush2.msra.mxu0 0.0
    %175 = vmatprep.subr.mxu0 0.0
    %176 = vmatpush2.msra.mxu0 0.0
    %177 = vmatprep.subr.mxu0 0.0
    %178 = vmatpush2.msra.mxu0 0.0
    %179 = vmatprep.subr.mxu0 0.0
    %180 = vmatpush2.msra.mxu0 0.0
    %181 = vmatprep.subr.mxu0 0.0
    %182 = vmatpush2.msra.mxu0 0.0
    %183 = vmatprep.subr.mxu0 0.0
    %184 = vmatpush2.msra.mxu0 0.0
    %185 = vmatprep.subr.mxu0 0.0
    %186 = vmatpush2.msra.mxu0 0.0
    %187 = vmatprep.subr.mxu0 0.0
    %188 = vmatpush2.msra.mxu0 0.0
    %189 = vmatprep.subr.mxu0 0.0
    %190 = vmatpush2.msra.mxu0 0.0
    %191 = vmatprep.subr.mxu0 0.0
    %192 = vmatpush2.msra.mxu0 0.0
    %193 = vmatprep.subr.mxu0 0.0
    %194 = vmatpush2.msra.mxu0 0.0
    %195 = vmatprep.subr.mxu0 0.0
    %196 = vmatpush2.msra.mxu0 0.0
    %197 = vmatprep.subr.mxu0 0.0
    %198 = vmatpush2.msra.mxu0 0.0
    %199 = vmatprep.subr.mxu0 0.0
    %200 = vmatpush2.msra.mxu0 0.0
    %201 = vmatprep.subr.mxu0 0.0
    %202 = vmatpush2.msra.mxu0 0.0
    %203 = vmatprep.mubr.f32.mxu0 0.0
    %204 = vmatmul.mubr.f32.gmra.mxu0 %v137
    %v205 = vpop.f32.mrf.mxu0
    %v206 = vadd.f32 %v133, %v205
    %v207 = vpop.f32.mrf.mxu0
    %208 = vdwg.mxu0
    %vm209 = vcmask 588800
    %210 = vst.msk [vmem:[#allocation2] sm:$0xff] %vm209, %v206
    // Predicated region
    $region22: #{tpu_custom_call.1} parent=1 // pred_check
      _
    $region23: #{tpu_custom_call.1} parent=1 // pred_check_branch
      %212 = sbr.rel (0) target = $region25
    $region24: #{tpu_custom_call.1} parent=1 // pred_region
      %s214 = ssub.s32 128, 128
      %215 = vsyncadd [#allocation3], %s214
      %s217 = sshll.u32 [#allocation2], 4
      %s218 = int_to_ptr.vmem [resolvable:$true] %s217
      %220 = dma.vmem_to_hbm [thread:$0]  %s218, 128, %s5, [#allocation3]
    $region25: #{tpu_custom_call.1} parent=1 // pred_fallthru
      _
    // Predicated region
    $region26: #{tpu_custom_call.1} parent=1 // pred_check
      _
    $region27: #{tpu_custom_call.1} parent=1 // pred_check_branch
      %222 = sbr.rel (0) target = $region29
    $region28: #{tpu_custom_call.1} parent=1 // pred_region
      %223 = dma.done [#allocation3], 128
    $region29: #{tpu_custom_call.1} parent=1 // pred_fallthru
      _
    %224 = vsyncpa [#allocation3], 1

</llo_original>
